<compile_context>
chip_gen: v5e
topology: v5e:2x2
jax: 0.10.0
libtpu: 0.0.40
codegen_flags: <defaults>
</compile_context>

<pallas_src>
import jax
import jax.numpy as jnp
from jax import lax
from jax.experimental import pallas as pl
from jax.experimental.pallas import tpu as pltpu


def _round_up(x, m):
    return ((x + m - 1) // m) * m


# ----------------------------------------------------------------------------
# Pallas kernel
# ----------------------------------------------------------------------------
def _make_kernel(window, n_win_p, n_windows, n_heads, head_dim, activation, causal):
    NEG = -1e30
    H, D, W, WP = n_heads, head_dim, n_windows, n_win_p
    HD = H * D
    ROWS = W * WP
    G = H * W

    def kernel(x_ref, wqkv_ref, wout_ref, pos_ref, mask_ref, temp_ref, o_ref):
        # x_ref:    (1, ROWS, C)         ROWS = W * WP
        # wqkv_ref: (C, 3*H*D)           fused [Wq | Wk | Wv]
        # wout_ref: (H*D, C_pad)         C_pad = round_up(C, 128), zero padded
        # pos_ref:  (H, WP, WP)          additive positional bias
        # mask_ref: (1, W, WP)           float32, 1.0 => padded/masked token
        # temp_ref: (1,) float32 in SMEM (learned temperature)
        # o_ref:    (1, ROWS, C_pad)
        x = x_ref[0]                                        # (ROWS, C)
        temp = temp_ref[0]
        mw = mask_ref[0]                                    # (W, WP)

        # --- fused QKV projection: one MXU matmul over the whole row slab ---
        qkv = jnp.dot(x, wqkv_ref[...],
                      preferred_element_type=jnp.float32)   # (ROWS, 3*HD)

        # --- split into head/window-batched layout (G = H*W, WP, D) ---
        def gather_heads(base):
            parts = []
            for h in range(H):                              # H is small; done once
                c0 = base + h * D
                parts.append(qkv[:, c0:c0 + D].reshape(1, W, WP, D))
            return jnp.concatenate(parts, axis=0).reshape(G, WP, D)

        q = gather_heads(0)
        k = gather_heads(HD)
        v = gather_heads(2 * HD)

        # --- L2 normalize over head_dim; matches F.normalize(p=2, eps=1e-12) ---
        def l2n(t):
            ss = jnp.sum(t * t, axis=-1, keepdims=True)
            return t / jnp.maximum(jnp.sqrt(ss), 1e-12)

        qn, kn = l2n(q), l2n(k)

        # --- cosine attention scores, batched over (head, window) ---
        dots = jnp.einsum("gid,gjd->gij", qn, kn,
                          preferred_element_type=jnp.float32)        # (G, WP, WP)
        dots = dots.reshape(H, W, WP, WP) * temp + pos_ref[...][:, None, :, :]

        # pair mask built in-kernel from the per-token mask: masked if i OR j padded
        pairm = jnp.maximum(mw[:, :, None], mw[:, None, :])          # (W, WP, WP)
        if causal:
            rows = lax.broadcasted_iota(jnp.int32, (WP, WP), 0)
            cols = lax.broadcasted_iota(jnp.int32, (WP, WP), 1)
            pairm = jnp.maximum(pairm, (cols > rows).astype(jnp.float32)[None])
        dots = jnp.where(pairm[None] > 0.5, NEG, dots)               # (H, W, WP, WP)

        if activation == "softmax":
            m = jnp.max(dots, axis=-1, keepdims=True)
            e = jnp.exp(dots - m)
            if WP > window:
                # Exclude the sublane-pad columns (j >= window) from the softmax
                # denominator.  PyTorch only ever sees `window` columns, so a
                # fully-masked row must normalize by `window`, not WP.
                cols = lax.broadcasted_iota(jnp.int32, (WP, WP), 1)
                col_ok = (cols < window).astype(jnp.float32)          # (WP, WP)
                e = e * col_ok[None, None]
            s = jnp.sum(e, axis=-1, keepdims=True)
            attn = e * (1.0 / s)                                      # exact recip
        else:  # 'relusq' (unnormalized ReLU^2, matches ReLUSquared)
            r = jnp.maximum(dots, 0.0)
            attn = r * r

        attn = attn.reshape(G, WP, WP)
        og = jnp.einsum("gij,gjd->gid", attn, v,
                        preferred_element_type=jnp.float32)          # (G, WP, D)

        # --- merge heads back to (ROWS, H*D) and apply the out projection ---
        og4 = og.reshape(H, W, WP, D)
        merged = jnp.concatenate(
            [og4[h].reshape(ROWS, D) for h in range(H)], axis=-1)    # (ROWS, HD)

        out = jnp.dot(merged, wout_ref[...],
                      preferred_element_type=jnp.float32)            # (ROWS, C_pad)
        o_ref[0] = out                                               # full-lane store

    return kernel


# ----------------------------------------------------------------------------
# Wrapper (glue in plain JAX)
# ----------------------------------------------------------------------------
def cosine_attention_pallas(x, mask, params, pos_table, *, n_heads, head_dim,
                            activation="softmax", causal=False):
    """x: (B, N, C) float32; mask: (B, N) bool (True = padding/masked)."""
    B, N, C = x.shape
    H, D = n_heads, head_dim
    HD = H * D
    window = 25 if N > 45 else N

    # pad_to_window_size
    pad_n = (window - N % window) % window
    if pad_n > 0:
        x = jnp.concatenate([x, jnp.zeros((B, pad_n, C), x.dtype)], axis=1)
        mask = jnp.concatenate([mask, jnp.ones((B, pad_n), dtype=bool)], axis=1)
    Np = x.shape[1]
    W = Np // window

    # pad each window to a multiple of 8 rows (sublane alignment); pad rows masked
    WP = _round_up(window, 8)
    xw = x.reshape(B, W, window, C)
    mw = mask.reshape(B, W, window)
    if WP > window:
        xw = jnp.concatenate(
            [xw, jnp.zeros((B, W, WP - window, C), x.dtype)], axis=2)
        mw = jnp.concatenate(
            [mw, jnp.ones((B, W, WP - window), dtype=bool)], axis=2)
        pos_table = jnp.pad(pos_table,
                            ((0, 0), (0, WP - window), (0, WP - window)))
    ROWS = W * WP
    x_rows = xw.reshape(B, ROWS, C).astype(jnp.float32)
    mask_f = mw.astype(jnp.float32)

    # fused qkv weight (C, 3*HD); out-proj weight zero-padded to 128 lanes
    wqkv = jnp.concatenate([params["wq"], params["wk"], params["wv"]], axis=1)
    C_pad = _round_up(C, 128)
    wout = params["wout"]
    if C_pad > C:
        wout = jnp.pad(wout, ((0, 0), (0, C_pad - C)))
    temp = params["temperature"].reshape(1).astype(jnp.float32)

    kernel = _make_kernel(window, WP, W, H, D, activation, causal)

    grid_spec = pltpu.PrefetchScalarGridSpec(
        num_scalar_prefetch=0,
        grid=(B,),
        in_specs=[
            pl.BlockSpec((1, ROWS, C), lambda b: (b, 0, 0)),       # x row slab
            pl.BlockSpec((C, 3 * HD), lambda b: (0, 0)),           # fused Wqkv
            pl.BlockSpec((HD, C_pad), lambda b: (0, 0)),           # Wout (lane-padded)
            pl.BlockSpec((H, WP, WP), lambda b: (0, 0, 0)),        # pos bias
            pl.BlockSpec((1, W, WP), lambda b: (b, 0, 0)),         # per-token mask
            pl.BlockSpec(memory_space=pltpu.MemorySpace.SMEM),     # temperature
        ],
        out_specs=pl.BlockSpec((1, ROWS, C_pad), lambda b: (b, 0, 0)),
    )

    out = pl.pallas_call(
        kernel,
        out_shape=jax.ShapeDtypeStruct((B, ROWS, C_pad), jnp.float32),
        grid_spec=grid_spec,
        compiler_params=pltpu.CompilerParams(
            dimension_semantics=("parallel",)),
    )(x_rows, wqkv, wout, pos_table, mask_f, temp)

    # strip the window-row padding and the lane padding, undo window reshape + seq pad
    out = out.reshape(B, W, WP, C_pad)[:, :, :window, :C].reshape(B, Np, C)
    if pad_n > 0:
        out = out[:, :-pad_n]
    return out


# ----------------------------------------------------------------------------
# Pure-JAX reference (mirrors the PyTorch forward exactly)
# ----------------------------------------------------------------------------
def cosine_attention_ref(x, mask, W_qkv, W_out, temperature, pos_table, *,
                         n_heads, head_dim, causal=False):
    B, N, C = x.shape
    window = 25 if N > 45 else N
    pad_n = (window - N % window) % window
    if pad_n > 0:
        x = jnp.concatenate([x, jnp.zeros((B, pad_n, C), x.dtype)], axis=1)
        mask = jnp.concatenate([mask, jnp.ones((B, pad_n), dtype=bool)], axis=1)
    Np = x.shape[1]
    W = Np // window
    xw = x.reshape(B, W, window, C)
    mw = mask.reshape(B, W, window)

    qkv = jnp.einsum("bwnc,oc->bwno", xw, W_qkv)           # nn.Linear: x @ W.T
    qkv = qkv.reshape(B, W, window, n_heads, head_dim, 3)  # (h d qkv), qkv fastest
    q = jnp.transpose(qkv[..., 0], (0, 3, 1, 2, 4))        # b h w n d
    k = jnp.transpose(qkv[..., 1], (0, 3, 1, 2, 4))
    v = jnp.transpose(qkv[..., 2], (0, 3, 1, 2, 4))

    def l2n(t):
        return t / jnp.maximum(
            jnp.sqrt(jnp.sum(t * t, axis=-1, keepdims=True)), 1e-12)

    q, k = l2n(q), l2n(k)
    dots = jnp.einsum("bhwid,bhwjd->bhwij", q, k) * temperature
    dots = dots + pos_table[:, None]                       # (h,1,n,n) broadcast
    valid = ~mw
    attn_mask = ~(valid[:, None, :, :, None] & valid[:, None, :, None, :])
    if causal:
        cmask = jnp.triu(jnp.ones((window, window), dtype=bool), k=1)
        attn_mask = attn_mask | cmask
    dots = jnp.where(attn_mask, -jnp.finfo(jnp.float32).max, dots)
    attn = jax.nn.softmax(dots, axis=-1)
    out = jnp.einsum("bhwij,bhwjd->bhwid", attn, v)
    out = jnp.transpose(out, (0, 2, 3, 1, 4)).reshape(B, Np, n_heads * head_dim)
    out = jnp.einsum("bnd,cd->bnc", out, W_out)
    if pad_n > 0:
        out = out[:, :-pad_n]
    return out


# ----------------------------------------------------------------------------
# Deterministic parameter init + weight re-interleaving
# ----------------------------------------------------------------------------
def init_params(key, n_feats, n_heads, head_dim, temperature=15.5):
    k1, k2 = jax.random.split(key)
    hd = n_heads * head_dim
    # PyTorch conventions: qkv_proj.weight (3*H*D, C); out_proj.weight (C, H*D)
    W_qkv = jax.random.normal(k1, (3 * hd, n_feats), jnp.float32) * 0.02
    W_out = jax.random.normal(k2, (n_feats, hd), jnp.float32) * 0.02

    # '(h d qkv)' layout of the qkv output dim: index = h*D*3 + d*3 + s
    Wr = W_qkv.reshape(n_heads, head_dim, 3, n_feats)
    wq = Wr[:, :, 0, :].reshape(hd, n_feats).T   # (C, H*D)
    wk = Wr[:, :, 1, :].reshape(hd, n_feats).T
    wv = Wr[:, :, 2, :].reshape(hd, n_feats).T
    wout = W_out.T                               # (H*D, C)

    kernel_params = {
        "wq": wq, "wk": wk, "wv": wv, "wout": wout,
        "temperature": jnp.asarray(temperature, jnp.float32),
    }
    torch_params = {"W_qkv": W_qkv, "W_out": W_out,
                    "temperature": jnp.asarray(temperature, jnp.float32)}
    return kernel_params, torch_params


def make_pos_table(n, n_heads):
    # deterministic stand-in for pos_fn(n) -> (n_heads, n, n) additive bias
    return jax.random.normal(jax.random.PRNGKey(42), (n_heads, n, n),
                             jnp.float32) * 0.02


def _run_case(B, N, C, n_heads, head_dim, key, mask_fn):
    kx, kp = jax.random.split(key)
    x = jax.random.normal(kx, (B, N, C), jnp.float32)
    mask = mask_fn(jnp.zeros((B, N), dtype=bool))
    kernel_params, torch_params = init_params(kp, C, n_heads, head_dim)
    window = 25 if N > 45 else N
    pos = make_pos_table(window, n_heads)

    out = cosine_attention_pallas(
        x, mask, kernel_params, pos,
        n_heads=n_heads, head_dim=head_dim, activation="softmax", causal=False)
    out = jax.block_until_ready(out)

    ref = cosine_attention_ref(
        x, mask, torch_params["W_qkv"], torch_params["W_out"],
        torch_params["temperature"], pos,
        n_heads=n_heads, head_dim=head_dim, causal=False)

    assert out.shape == (B, N, C), out.shape
    err = float(jnp.max(jnp.abs(out - ref)))
    assert jnp.allclose(out, ref, rtol=1e-3, atol=5e-4), err


if __name__ == "__main__":
    n_heads, head_dim = 4, 8    # H*D == 32

    # Case 1: short sequence (window == N, no padding path)
    _run_case(2, 8, 32, n_heads, head_dim, jax.random.PRNGKey(0),
              lambda m: m.at[1, -2:].set(True))

    # Case 2: long sequence (window=25 -> padded to 32 rows, W=3, seq pad 15)
    _run_case(2, 60, 32, n_heads, head_dim, jax.random.PRNGKey(1),
              lambda m: m.at[0, 55:].set(True))

    print("KERNEL_OK")
</pallas_src>

<mosaic_0001>
module attributes {stable_mosaic.version = 11 : i64} {
  func.func @kernel(%arg0: i32, %arg1: memref<1x8x32xf32, #tpu.memory_space<vmem>>, %arg2: memref<32x96xf32, #tpu.memory_space<vmem>>, %arg3: memref<32x128xf32, #tpu.memory_space<vmem>>, %arg4: memref<4x8x8xf32, #tpu.memory_space<vmem>>, %arg5: memref<1x1x8xf32, #tpu.memory_space<vmem>>, %arg6: memref<1xf32, #tpu.memory_space<smem>>, %arg7: memref<1x8x128xf32, #tpu.memory_space<vmem>>) attributes {dimension_semantics = [#tpu.dimension_semantics<parallel>], iteration_bounds = array<i64: 2>, scalar_prefetch = 0 : i64, scratch_operands = 0 : i64, tpu.core_type = #tpu.core_type<tc>, window_params = [{transform_indices = @transform_0, window_bounds = array<i64: 1, 8, 32>}, {pipeline_mode = #tpu.pipeline_mode<synchronous>, transform_indices = @transform_1, window_bounds = array<i64: 32, 96>}, {pipeline_mode = #tpu.pipeline_mode<synchronous>, transform_indices = @transform_2, window_bounds = array<i64: 32, 128>}, {pipeline_mode = #tpu.pipeline_mode<synchronous>, transform_indices = @transform_3, window_bounds = array<i64: 4, 8, 8>}, {transform_indices = @transform_4, window_bounds = array<i64: 1, 1, 8>}, {transform_indices = @transform_5, window_bounds = array<i64: 1>}, {transform_indices = @transform_6, window_bounds = array<i64: 1, 8, 128>}]} {
    %c0 = arith.constant 0 : index
    %c0_0 = arith.constant 0 : index
    %c0_1 = arith.constant 0 : index
    %0 = vector.load %arg1[%c0, %c0_0, %c0_1] : memref<1x8x32xf32, #tpu.memory_space<vmem>>, vector<1x8x32xf32>
    %1 = vector.shape_cast %0 : vector<1x8x32xf32> to vector<8x32xf32>
    %c0_2 = arith.constant 0 : index
    %2 = memref.load %arg6[%c0_2] : memref<1xf32, #tpu.memory_space<smem>>
    %c0_3 = arith.constant 0 : index
    %c0_4 = arith.constant 0 : index
    %c0_5 = arith.constant 0 : index
    %3 = vector.load %arg5[%c0_3, %c0_4, %c0_5] : memref<1x1x8xf32, #tpu.memory_space<vmem>>, vector<1x1x8xf32>
    %4 = vector.shape_cast %3 : vector<1x1x8xf32> to vector<1x8xf32>
    %c0_6 = arith.constant 0 : index
    %c0_7 = arith.constant 0 : index
    %5 = vector.load %arg2[%c0_6, %c0_7] : memref<32x96xf32, #tpu.memory_space<vmem>>, vector<32x96xf32>
    %cst = arith.constant dense<0.000000e+00> : vector<8x96xf32>
    %6 = tpu.matmul %1, %5, %cst {dimension_numbers = #tpu.dot_dimension_numbers<[1], [0], [0], [1], [0, 0, 1, 1], [], []>} : vector<8x32xf32>, vector<32x96xf32>, vector<8x96xf32> -> vector<8x96xf32>
    %7 = vector.extract_strided_slice %6 {offsets = [0, 0], sizes = [8, 8], strides = [1, 1]} : vector<8x96xf32> to vector<8x8xf32>
    %8 = vector.shape_cast %7 : vector<8x8xf32> to vector<1x1x8x8xf32>
    %9 = vector.extract_strided_slice %6 {offsets = [0, 8], sizes = [8, 8], strides = [1, 1]} : vector<8x96xf32> to vector<8x8xf32>
    %10 = vector.shape_cast %9 : vector<8x8xf32> to vector<1x1x8x8xf32>
    %11 = vector.extract_strided_slice %6 {offsets = [0, 16], sizes = [8, 8], strides = [1, 1]} : vector<8x96xf32> to vector<8x8xf32>
    %12 = vector.shape_cast %11 : vector<8x8xf32> to vector<1x1x8x8xf32>
    %13 = vector.extract_strided_slice %6 {offsets = [0, 24], sizes = [8, 8], strides = [1, 1]} : vector<8x96xf32> to vector<8x8xf32>
    %14 = vector.shape_cast %13 : vector<8x8xf32> to vector<1x1x8x8xf32>
    %15 = tpu.concatenate %8, %10, %12, %14 in 0 : vector<1x1x8x8xf32>, vector<1x1x8x8xf32>, vector<1x1x8x8xf32>, vector<1x1x8x8xf32> -> vector<4x1x8x8xf32>
    %16 = vector.shape_cast %15 : vector<4x1x8x8xf32> to vector<4x8x8xf32>
    %17 = vector.extract_strided_slice %6 {offsets = [0, 32], sizes = [8, 8], strides = [1, 1]} : vector<8x96xf32> to vector<8x8xf32>
    %18 = vector.shape_cast %17 : vector<8x8xf32> to vector<1x1x8x8xf32>
    %19 = vector.extract_strided_slice %6 {offsets = [0, 40], sizes = [8, 8], strides = [1, 1]} : vector<8x96xf32> to vector<8x8xf32>
    %20 = vector.shape_cast %19 : vector<8x8xf32> to vector<1x1x8x8xf32>
    %21 = vector.extract_strided_slice %6 {offsets = [0, 48], sizes = [8, 8], strides = [1, 1]} : vector<8x96xf32> to vector<8x8xf32>
    %22 = vector.shape_cast %21 : vector<8x8xf32> to vector<1x1x8x8xf32>
    %23 = vector.extract_strided_slice %6 {offsets = [0, 56], sizes = [8, 8], strides = [1, 1]} : vector<8x96xf32> to vector<8x8xf32>
    %24 = vector.shape_cast %23 : vector<8x8xf32> to vector<1x1x8x8xf32>
    %25 = tpu.concatenate %18, %20, %22, %24 in 0 : vector<1x1x8x8xf32>, vector<1x1x8x8xf32>, vector<1x1x8x8xf32>, vector<1x1x8x8xf32> -> vector<4x1x8x8xf32>
    %26 = vector.shape_cast %25 : vector<4x1x8x8xf32> to vector<4x8x8xf32>
    %27 = vector.extract_strided_slice %6 {offsets = [0, 64], sizes = [8, 8], strides = [1, 1]} : vector<8x96xf32> to vector<8x8xf32>
    %28 = vector.shape_cast %27 : vector<8x8xf32> to vector<1x1x8x8xf32>
    %29 = vector.extract_strided_slice %6 {offsets = [0, 72], sizes = [8, 8], strides = [1, 1]} : vector<8x96xf32> to vector<8x8xf32>
    %30 = vector.shape_cast %29 : vector<8x8xf32> to vector<1x1x8x8xf32>
    %31 = vector.extract_strided_slice %6 {offsets = [0, 80], sizes = [8, 8], strides = [1, 1]} : vector<8x96xf32> to vector<8x8xf32>
    %32 = vector.shape_cast %31 : vector<8x8xf32> to vector<1x1x8x8xf32>
    %33 = vector.extract_strided_slice %6 {offsets = [0, 88], sizes = [8, 8], strides = [1, 1]} : vector<8x96xf32> to vector<8x8xf32>
    %34 = vector.shape_cast %33 : vector<8x8xf32> to vector<1x1x8x8xf32>
    %35 = tpu.concatenate %28, %30, %32, %34 in 0 : vector<1x1x8x8xf32>, vector<1x1x8x8xf32>, vector<1x1x8x8xf32>, vector<1x1x8x8xf32> -> vector<4x1x8x8xf32>
    %36 = vector.shape_cast %35 : vector<4x1x8x8xf32> to vector<4x8x8xf32>
    %37 = arith.mulf %16, %16 : vector<4x8x8xf32>
    %cst_8 = arith.constant dense<0.000000e+00> : vector<4x8xf32>
    %38 = vector.multi_reduction <add>, %37, %cst_8 [2] : vector<4x8x8xf32> to vector<4x8xf32>
    %39 = vector.shape_cast %38 : vector<4x8xf32> to vector<4x8x1xf32>
    %40 = math.sqrt %39 : vector<4x8x1xf32>
    %cst_9 = arith.constant 9.99999996E-13 : f32
    %41 = vector.broadcast %cst_9 : f32 to vector<4x8x1xf32>
    %42 = arith.maximumf %40, %41 : vector<4x8x1xf32>
    %43 = vector.broadcast %42 : vector<4x8x1xf32> to vector<4x8x8xf32>
    %44 = arith.divf %16, %43 : vector<4x8x8xf32>
    %45 = arith.mulf %26, %26 : vector<4x8x8xf32>
    %cst_10 = arith.constant dense<0.000000e+00> : vector<4x8xf32>
    %46 = vector.multi_reduction <add>, %45, %cst_10 [2] : vector<4x8x8xf32> to vector<4x8xf32>
    %47 = vector.shape_cast %46 : vector<4x8xf32> to vector<4x8x1xf32>
    %48 = math.sqrt %47 : vector<4x8x1xf32>
    %cst_11 = arith.constant 9.99999996E-13 : f32
    %49 = vector.broadcast %cst_11 : f32 to vector<4x8x1xf32>
    %50 = arith.maximumf %48, %49 : vector<4x8x1xf32>
    %51 = vector.broadcast %50 : vector<4x8x1xf32> to vector<4x8x8xf32>
    %52 = arith.divf %26, %51 : vector<4x8x8xf32>
    "tpu.trace_start"() <{level = 10 : i32, message = "gid,gjd->gij"}> : () -> ()
    %cst_12 = arith.constant dense<0.000000e+00> : vector<4x8x8xf32>
    %53 = tpu.matmul %44, %52, %cst_12 {dimension_numbers = #tpu.dot_dimension_numbers<[2], [2], [1], [1], [0, 0, 0, 1, 1, 1], [0], [0]>} : vector<4x8x8xf32>, vector<4x8x8xf32>, vector<4x8x8xf32> -> vector<4x8x8xf32>
    "tpu.trace_stop"() : () -> ()
    %54 = vector.shape_cast %53 : vector<4x8x8xf32> to vector<4x1x8x8xf32>
    %55 = vector.broadcast %2 : f32 to vector<4x1x8x8xf32>
    %56 = arith.mulf %54, %55 : vector<4x1x8x8xf32>
    %c0_13 = arith.constant 0 : index
    %c0_14 = arith.constant 0 : index
    %c0_15 = arith.constant 0 : index
    %57 = vector.load %arg4[%c0_13, %c0_14, %c0_15] : memref<4x8x8xf32, #tpu.memory_space<vmem>>, vector<4x8x8xf32>
    %58 = vector.shape_cast %57 : vector<4x8x8xf32> to vector<4x1x8x8xf32>
    %59 = arith.addf %56, %58 : vector<4x1x8x8xf32>
    %60 = vector.shape_cast %4 : vector<1x8xf32> to vector<1x8x1xf32>
    %61 = vector.shape_cast %4 : vector<1x8xf32> to vector<1x1x8xf32>
    %62 = vector.broadcast %60 : vector<1x8x1xf32> to vector<1x8x8xf32>
    %63 = vector.broadcast %61 : vector<1x1x8xf32> to vector<1x8x8xf32>
    %64 = arith.maximumf %62, %63 : vector<1x8x8xf32>
    %65 = vector.shape_cast %64 : vector<1x8x8xf32> to vector<1x1x8x8xf32>
    %cst_16 = arith.constant 5.000000e-01 : f32
    %66 = vector.broadcast %cst_16 : f32 to vector<1x1x8x8xf32>
    %67 = arith.cmpf ogt, %65, %66 : vector<1x1x8x8xf32>
    %cst_17 = arith.constant -1.000000e+30 : f32
    %68 = vector.shape_cast %67 : vector<1x1x8x8xi1> to vector<1x1x8x8xi1>
    %69 = vector.broadcast %68 : vector<1x1x8x8xi1> to vector<4x1x8x8xi1>
    %70 = vector.broadcast %cst_17 : f32 to vector<4x1x8x8xf32>
    %71 = arith.select %69, %70, %59 : vector<4x1x8x8xi1>, vector<4x1x8x8xf32>
    %cst_18 = arith.constant dense<0xFF800000> : vector<4x1x8xf32>
    %72 = vector.multi_reduction <maximumf>, %71, %cst_18 [3] : vector<4x1x8x8xf32> to vector<4x1x8xf32>
    %73 = vector.shape_cast %72 : vector<4x1x8xf32> to vector<4x1x8x1xf32>
    %74 = vector.broadcast %73 : vector<4x1x8x1xf32> to vector<4x1x8x8xf32>
    %75 = arith.subf %71, %74 : vector<4x1x8x8xf32>
    %76 = math.exp %75 : vector<4x1x8x8xf32>
    %cst_19 = arith.constant dense<0.000000e+00> : vector<4x1x8xf32>
    %77 = vector.multi_reduction <add>, %76, %cst_19 [3] : vector<4x1x8x8xf32> to vector<4x1x8xf32>
    %78 = vector.shape_cast %77 : vector<4x1x8xf32> to vector<4x1x8x1xf32>
    %cst_20 = arith.constant 1.000000e+00 : f32
    %79 = vector.broadcast %cst_20 : f32 to vector<4x1x8x1xf32>
    %80 = arith.divf %79, %78 : vector<4x1x8x1xf32>
    %81 = vector.broadcast %80 : vector<4x1x8x1xf32> to vector<4x1x8x8xf32>
    %82 = arith.mulf %76, %81 : vector<4x1x8x8xf32>
    %83 = vector.shape_cast %82 : vector<4x1x8x8xf32> to vector<4x8x8xf32>
    "tpu.trace_start"() <{level = 10 : i32, message = "gij,gjd->gid"}> : () -> ()
    %cst_21 = arith.constant dense<0.000000e+00> : vector<4x8x8xf32>
    %84 = tpu.matmul %83, %36, %cst_21 {dimension_numbers = #tpu.dot_dimension_numbers<[2], [1], [1], [2], [0, 0, 0, 1, 1, 2], [0], [0]>} : vector<4x8x8xf32>, vector<4x8x8xf32>, vector<4x8x8xf32> -> vector<4x8x8xf32>
    "tpu.trace_stop"() : () -> ()
    %85 = vector.shape_cast %84 : vector<4x8x8xf32> to vector<4x1x8x8xf32>
    %86 = vector.extract_strided_slice %85 {offsets = [0, 0, 0, 0], sizes = [1, 1, 8, 8], strides = [1, 1, 1, 1]} : vector<4x1x8x8xf32> to vector<1x1x8x8xf32>
    %87 = vector.shape_cast %86 : vector<1x1x8x8xf32> to vector<1x8x8xf32>
    %88 = vector.shape_cast %87 : vector<1x8x8xf32> to vector<8x8xf32>
    %89 = vector.extract_strided_slice %85 {offsets = [1, 0, 0, 0], sizes = [1, 1, 8, 8], strides = [1, 1, 1, 1]} : vector<4x1x8x8xf32> to vector<1x1x8x8xf32>
    %90 = vector.shape_cast %89 : vector<1x1x8x8xf32> to vector<1x8x8xf32>
    %91 = vector.shape_cast %90 : vector<1x8x8xf32> to vector<8x8xf32>
    %92 = vector.extract_strided_slice %85 {offsets = [2, 0, 0, 0], sizes = [1, 1, 8, 8], strides = [1, 1, 1, 1]} : vector<4x1x8x8xf32> to vector<1x1x8x8xf32>
    %93 = vector.shape_cast %92 : vector<1x1x8x8xf32> to vector<1x8x8xf32>
    %94 = vector.shape_cast %93 : vector<1x8x8xf32> to vector<8x8xf32>
    %95 = vector.extract_strided_slice %85 {offsets = [3, 0, 0, 0], sizes = [1, 1, 8, 8], strides = [1, 1, 1, 1]} : vector<4x1x8x8xf32> to vector<1x1x8x8xf32>
    %96 = vector.shape_cast %95 : vector<1x1x8x8xf32> to vector<1x8x8xf32>
    %97 = vector.shape_cast %96 : vector<1x8x8xf32> to vector<8x8xf32>
    %98 = tpu.concatenate %88, %91, %94, %97 in 1 : vector<8x8xf32>, vector<8x8xf32>, vector<8x8xf32>, vector<8x8xf32> -> vector<8x32xf32>
    %c0_22 = arith.constant 0 : index
    %c0_23 = arith.constant 0 : index
    %99 = vector.load %arg3[%c0_22, %c0_23] : memref<32x128xf32, #tpu.memory_space<vmem>>, vector<32x128xf32>
    %cst_24 = arith.constant dense<0.000000e+00> : vector<8x128xf32>
    %100 = tpu.matmul %98, %99, %cst_24 {dimension_numbers = #tpu.dot_dimension_numbers<[1], [0], [0], [1], [0, 0, 1, 1], [], []>} : vector<8x32xf32>, vector<32x128xf32>, vector<8x128xf32> -> vector<8x128xf32>
    %c0_25 = arith.constant 0 : index
    %c0_26 = arith.constant 0 : index
    %c0_27 = arith.constant 0 : index
    %101 = vector.load %arg7[%c0_25, %c0_26, %c0_27] : memref<1x8x128xf32, #tpu.memory_space<vmem>>, vector<1x8x128xf32>
    %102 = vector.shape_cast %101 : vector<1x8x128xf32> to vector<8x128xf32>
    %103 = vector.shape_cast %100 : vector<8x128xf32> to vector<1x8x128xf32>
    tpu.vector_store %arg7[%c0_25, %c0_26, %c0_27], %103 {strides = array<i32>} : memref<1x8x128xf32, #tpu.memory_space<vmem>>, vector<1x8x128xf32>,
    return
  }
  func.func @transform_0(%arg0: i32) -> (i32, i32, i32) {
    %c0_i32 = arith.constant 0 : i32
    %c0_i32_0 = arith.constant 0 : i32
    %c0_i32_1 = arith.constant 0 : i32
    return %arg0, %c0_i32, %c0_i32_0 : i32, i32, i32
  }
  func.func @transform_1(%arg0: i32) -> (i32, i32) {
    %c0_i32 = arith.constant 0 : i32
    %c0_i32_0 = arith.constant 0 : i32
    %c0_i32_1 = arith.constant 0 : i32
    return %c0_i32, %c0_i32_0 : i32, i32
  }
  func.func @transform_2(%arg0: i32) -> (i32, i32) {
    %c0_i32 = arith.constant 0 : i32
    %c0_i32_0 = arith.constant 0 : i32
    %c0_i32_1 = arith.constant 0 : i32
    return %c0_i32, %c0_i32_0 : i32, i32
  }
  func.func @transform_3(%arg0: i32) -> (i32, i32, i32) {
    %c0_i32 = arith.constant 0 : i32
    %c0_i32_0 = arith.constant 0 : i32
    %c0_i32_1 = arith.constant 0 : i32
    %c0_i32_2 = arith.constant 0 : i32
    return %c0_i32, %c0_i32_0, %c0_i32_1 : i32, i32, i32
  }
  func.func @transform_4(%arg0: i32) -> (i32, i32, i32) {
    %c0_i32 = arith.constant 0 : i32
    %c0_i32_0 = arith.constant 0 : i32
    %c0_i32_1 = arith.constant 0 : i32
    return %arg0, %c0_i32, %c0_i32_0 : i32, i32, i32
  }
  func.func @transform_5(%arg0: i32) -> i32 {
    %c0_i32 = arith.constant 0 : i32
    %c0_i32_0 = arith.constant 0 : i32
    return %c0_i32 : i32
  }
  func.func @transform_6(%arg0: i32) -> (i32, i32, i32) {
    %c0_i32 = arith.constant 0 : i32
    %c0_i32_0 = arith.constant 0 : i32
    %c0_i32_1 = arith.constant 0 : i32
    return %arg0, %c0_i32, %c0_i32_0 : i32, i32, i32
  }
}

</mosaic_0001>

<llo_original>
// kernel: tpu_custom_call.1
$region0: #{tpu_custom_call.1}
  #allocation0 [shape = 'u32[]', space=smem, size = 0x4, offset = 0x4, fixed_abs, tag = 'smem constant byte address 0x4 - core index']
  #allocation1 [shape = 'u32[72,128]{1,0:T(1,128)}', space=vmem, size = 0x9000, scoped, tag = 'internal scratch']
  #allocation2 [shape = 'f32[1]{0:T(128)S(6)}', space=smem, size = 0x200, scoped, tag = 'scoped memory for tpu_custom_call.1']
  %s0 = inlined_call_operand.hbm [shape: f32[2,8,32], index: 0, kind: input, shape index: {}]
  %s1 = inlined_call_operand.hbm [shape: f32[32,96], index: 1, kind: input, shape index: {}]
  %s2 = inlined_call_operand.hbm [shape: f32[32,128], index: 2, kind: input, shape index: {}]
  %s3 = inlined_call_operand.hbm [shape: f32[4,8,8], index: 3, kind: input, shape index: {}]
  %s4 = inlined_call_operand.vmem [shape: f32[2,1,8], index: 4, kind: input, shape index: {}]
  %s5 = inlined_call_operand.<no memory space> [shape: f32[1], index: 5, kind: input, shape index: {}]
  %s6 = inlined_call_operand.hbm [shape: f32[2,8,128], index: 6, kind: output, shape index: {}]
  %s7 = sld [smem:[#allocation0]]
  $region73: #{tpu_custom_call.1} parent=0
    _
  %s9 = ssub.s32 1, %s7
  %s10 = scalar_select 0, %s9, %s7
  %11 = sst [smem:[#allocation2]] %s5
  $region1: #{tpu_custom_call.1} parent=0
    #allocation3 [shape = 'u8[8192]{0}', space=vmem, size = 0x2000, scoped, tag = 'input window, operand 0']
    #allocation4 [shape = 's32[2]{0}', space=sflag, size = 0x8, scoped, tag = 'scoped memory for tpu_custom_call.1']
    #allocation5 [shape = 's32[2]{0}', space=sflag, size = 0x8, scoped, tag = 'scoped memory for tpu_custom_call.1']
    #allocation6 [shape = 'u8[16384]{0}', space=vmem, size = 0x4000, scoped, tag = 'input window, operand 1, single buffered']
    #allocation7 [shape = 's32[1]{0}', space=sflag, size = 0x4, scoped, tag = 'scoped memory for tpu_custom_call.1']
    #allocation8 [shape = 'u8[16384]{0}', space=vmem, size = 0x4000, scoped, tag = 'input window, operand 2, single buffered']
    #allocation9 [shape = 'u8[16384]{0}', space=vmem, size = 0x4000, scoped, tag = 'input window, operand 3, single buffered']
    #allocation10 [shape = 's32[1]{0}', space=sflag, size = 0x4, scoped, tag = 'scoped memory for tpu_custom_call.1']
    #allocation11 [shape = 'u8[8192]{0}', space=vmem, size = 0x2000, scoped, tag = 'output window, operand 0']
    %12 = vsyncpa [#allocation4], 0
    %s13 = scalar_lea.sflag [#allocation4], 1
    %14 = vsyncpa %s13, 0
    %15 = vsyncpa [#allocation7], 0
    %16 = vsyncpa [#allocation10], 0
    %17 = vsyncpa [#allocation5], 0
    %s18 = scalar_lea.sflag [#allocation5], 1
    %19 = vsyncpa %s18, 0
    loop: start=0, step=1, limit=4
    $region2: #{tpu_custom_call.1} parent=1 // loop_pre_header
      _
    $region3: #{tpu_custom_call.1} parent=1 // loop_header
      %s21 = sphi 0, %s25
      %p22 = scmp.ge.s32.totalorder %s21, 4
      %s31 = sphi 0, %s33
      %s34 = sphi 0, %s31
      %s35 = sphi 0, %s34
      %s51 = sphi 0, %s35
      %s55 = sphi 0, %s55
      %s57 = sphi 0, %s55
      %s58 = sphi 0, %s57
      %s72 = sphi 0, %s58
      %s76 = sphi 0, %s76
      %s78 = sphi 0, %s76
      %s79 = sphi 0, %s78
      %s93 = sphi 0, %s79
      %s97 = sphi 0, %s97
      %s99 = sphi 0, %s97
      %s100 = sphi 0, %s99
      %s114 = sphi 0, %s100
      %s120 = sphi 0, %s122
      %s123 = sphi 0, %s120
      %s124 = sphi 0, %s123
      %s140 = sphi 0, %s124
      %s144 = sphi 0, %s144
      %s146 = sphi 0, %s144
      %s147 = sphi 0, %s146
      %s161 = sphi 0, %s147
      %s167 = sphi 0, %s169
      %s170 = sphi 0, %s167
      %s171 = sphi 0, %s170
      %s187 = sphi 0, %s171
    $region4: #{tpu_custom_call.1} parent=1 // loop_header_branch
      %24 = sbr.rel (%p22) target = $region8
    $region5: #{tpu_custom_call.1} parent=1 // loop_body
      %s26 = ssub.s32 %s21, 1
      %s27 = ssub.s32 %s21, 2
      %s28 = sadd.s32 %s21, 1
      %s29 = ssub.s32 %s21, %s28
      %p30 = scmp.eq.s32.totalorder %s29, 0
      %s32 = sadd.s32 %s31, 1
      %s33 = scalar_select %p30, %s31, %s32
      %p36 = pneg %p30
      %p37 = scmp.eq.s32.totalorder %s21, 1
      %p38 = por %p36, %p37
      %p39 = scmp.ne.s32.totalorder %s31, %s34
      %p40 = scmp.eq.s32.totalorder %s21, 0
      %p41 = por %p39, %p40
      %p42 = scmp.ne.s32.totalorder %s31, %s34
      %p43 = scmp.eq.s32.totalorder %s26, 1
      %p44 = por %p42, %p43
      %p45 = scmp.ne.s32.totalorder %s34, %s35
      %p46 = scmp.eq.s32.totalorder %s26, 0
      %p47 = por %p45, %p46
      %p48 = scmp.ne.s32.totalorder %s34, %s35
      %p49 = scmp.eq.s32.totalorder %s27, 1
      %p50 = por %p48, %p49
      %p52 = scmp.ne.s32.totalorder %s35, %s51
      %p53 = scmp.eq.s32.totalorder %s27, 0
      %p54 = por %p52, %p53
      %s56 = sadd.s32 %s55, 1
      %p59 = scmp.eq.s32.totalorder %s21, 1
      %p60 = scmp.ne.s32.totalorder %s55, %s57
      %p61 = scmp.eq.s32.totalorder %s21, 0
      %p62 = por %p60, %p61
      %p63 = scmp.ne.s32.totalorder %s55, %s57
      %p64 = scmp.eq.s32.totalorder %s26, 1
      %p65 = por %p63, %p64
      %p66 = scmp.ne.s32.totalorder %s57, %s58
      %p67 = scmp.eq.s32.totalorder %s26, 0
      %p68 = por %p66, %p67
      %p69 = scmp.ne.s32.totalorder %s57, %s58
      %p70 = scmp.eq.s32.totalorder %s27, 1
      %p71 = por %p69, %p70
      %p73 = scmp.ne.s32.totalorder %s58, %s72
      %p74 = scmp.eq.s32.totalorder %s27, 0
      %p75 = por %p73, %p74
      %s77 = sadd.s32 %s76, 1
      %p80 = scmp.eq.s32.totalorder %s21, 1
      %p81 = scmp.ne.s32.totalorder %s76, %s78
      %p82 = scmp.eq.s32.totalorder %s21, 0
      %p83 = por %p81, %p82
      %p84 = scmp.ne.s32.totalorder %s76, %s78
      %p85 = scmp.eq.s32.totalorder %s26, 1
      %p86 = por %p84, %p85
      %p87 = scmp.ne.s32.totalorder %s78, %s79
      %p88 = scmp.eq.s32.totalorder %s26, 0
      %p89 = por %p87, %p88
      %p90 = scmp.ne.s32.totalorder %s78, %s79
      %p91 = scmp.eq.s32.totalorder %s27, 1
      %p92 = por %p90, %p91
      %p94 = scmp.ne.s32.totalorder %s79, %s93
      %p95 = scmp.eq.s32.totalorder %s27, 0
      %p96 = por %p94, %p95
      %s98 = sadd.s32 %s97, 1
      %p101 = scmp.eq.s32.totalorder %s21, 1
      %p102 = scmp.ne.s32.totalorder %s97, %s99
      %p103 = scmp.eq.s32.totalorder %s21, 0
      %p104 = por %p102, %p103
      %p105 = scmp.ne.s32.totalorder %s97, %s99
      %p106 = scmp.eq.s32.totalorder %s26, 1
      %p107 = por %p105, %p106
      %p108 = scmp.ne.s32.totalorder %s99, %s100
      %p109 = scmp.eq.s32.totalorder %s26, 0
      %p110 = por %p108, %p109
      %p111 = scmp.ne.s32.totalorder %s99, %s100
      %p112 = scmp.eq.s32.totalorder %s27, 1
      %p113 = por %p111, %p112
      %p115 = scmp.ne.s32.totalorder %s100, %s114
      %p116 = scmp.eq.s32.totalorder %s27, 0
      %p117 = por %p115, %p116
      %s118 = ssub.s32 %s21, %s28
      %p119 = scmp.eq.s32.totalorder %s118, 0
      %s121 = sadd.s32 %s120, 1
      %s122 = scalar_select %p119, %s120, %s121
      %p125 = pneg %p119
      %p126 = scmp.eq.s32.totalorder %s21, 1
      %p127 = por %p125, %p126
      %p128 = scmp.ne.s32.totalorder %s120, %s123
      %p129 = scmp.eq.s32.totalorder %s21, 0
      %p130 = por %p128, %p129
      %p131 = scmp.ne.s32.totalorder %s120, %s123
      %p132 = scmp.eq.s32.totalorder %s26, 1
      %p133 = por %p131, %p132
      %p134 = scmp.ne.s32.totalorder %s123, %s124
      %p135 = scmp.eq.s32.totalorder %s26, 0
      %p136 = por %p134, %p135
      %p137 = scmp.ne.s32.totalorder %s123, %s124
      %p138 = scmp.eq.s32.totalorder %s27, 1
      %p139 = por %p137, %p138
      %p141 = scmp.ne.s32.totalorder %s124, %s140
      %p142 = scmp.eq.s32.totalorder %s27, 0
      %p143 = por %p141, %p142
      %s145 = sadd.s32 %s144, 1
      %p148 = scmp.eq.s32.totalorder %s21, 1
      %p149 = scmp.ne.s32.totalorder %s144, %s146
      %p150 = scmp.eq.s32.totalorder %s21, 0
      %p151 = por %p149, %p150
      %p152 = scmp.ne.s32.totalorder %s144, %s146
      %p153 = scmp.eq.s32.totalorder %s26, 1
      %p154 = por %p152, %p153
      %p155 = scmp.ne.s32.totalorder %s146, %s147
      %p156 = scmp.eq.s32.totalorder %s26, 0
      %p157 = por %p155, %p156
      %p158 = scmp.ne.s32.totalorder %s146, %s147
      %p159 = scmp.eq.s32.totalorder %s27, 1
      %p160 = por %p158, %p159
      %p162 = scmp.ne.s32.totalorder %s147, %s161
      %p163 = scmp.eq.s32.totalorder %s27, 0
      %p164 = por %p162, %p163
      %s165 = ssub.s32 %s21, %s28
      %p166 = scmp.eq.s32.totalorder %s165, 0
      %s168 = sadd.s32 %s167, 1
      %s169 = scalar_select %p166, %s167, %s168
      %p172 = pneg %p166
      %p173 = scmp.eq.s32.totalorder %s21, 1
      %p174 = por %p172, %p173
      %p175 = scmp.ne.s32.totalorder %s167, %s170
      %p176 = scmp.eq.s32.totalorder %s21, 0
      %p177 = por %p175, %p176
      %p178 = scmp.ne.s32.totalorder %s167, %s170
      %p179 = scmp.eq.s32.totalorder %s26, 1
      %p180 = por %p178, %p179
      %p181 = scmp.ne.s32.totalorder %s170, %s171
      %p182 = scmp.eq.s32.totalorder %s26, 0
      %p183 = por %p181, %p182
      %p184 = scmp.ne.s32.totalorder %s170, %s171
      %p185 = scmp.eq.s32.totalorder %s27, 1
      %p186 = por %p184, %p185
      %p188 = scmp.ne.s32.totalorder %s171, %s187
      %p189 = scmp.eq.s32.totalorder %s27, 0
      %p190 = por %p188, %p189
      %p191 = scmp.le.s32.totalorder 1, %s21
      %p192 = scmp.lt.s32.totalorder %s21, 3
      %p193 = pnand %p191, %p192
      %p194 = pneg %p193
      // Predicated region
      $region9: #{tpu_custom_call.1} parent=5 // pred_check
        _
      $region10: #{tpu_custom_call.1} parent=5 // pred_check_branch
        %196 = sbr.rel (%p193) target = $region12
      $region11: #{tpu_custom_call.1} parent=5 // pred_region
        %s197 = ssub.s32 %s21, 1
        // Predicated region
        $region13: #{tpu_custom_call.1} parent=11 // pred_check
          %p198 = pneg %p68
        $region14: #{tpu_custom_call.1} parent=11 // pred_check_branch
          %200 = sbr.rel (%p198) target = $region16
        $region15: #{tpu_custom_call.1} parent=11 // pred_region
          %202 = vsyncadd [#allocation7], 0
          %s203 = sshll.u32 %s1, 4
          %s204 = int_to_ptr.hbm [resolvable:$true] %s203
          %s205 = sshll.u32 [#allocation6], 4
          %s206 = int_to_ptr.vmem [resolvable:$true] %s205
          %211 = dma.hbm_to_vmem [thread:$0]  %s204, 512, %s206, [#allocation7], 128, 128, 8
        $region16: #{tpu_custom_call.1} parent=11 // pred_fallthru
          _
        // Predicated region
        $region17: #{tpu_custom_call.1} parent=11 // pred_check
          %p212 = pneg %p89
        $region18: #{tpu_custom_call.1} parent=11 // pred_check_branch
          %214 = sbr.rel (%p212) target = $region20
        $region19: #{tpu_custom_call.1} parent=11 // pred_region
          %216 = vsyncadd [#allocation7], 0
          %s217 = sshll.u32 %s2, 4
          %s218 = int_to_ptr.hbm [resolvable:$true] %s217
          %s219 = sshll.u32 [#allocation8], 4
          %s220 = int_to_ptr.vmem [resolvable:$true] %s219
          %225 = dma.hbm_to_vmem [thread:$0]  %s218, 512, %s220, [#allocation7], 128, 128, 8
        $region20: #{tpu_custom_call.1} parent=11 // pred_fallthru
          _
        // Predicated region
        $region21: #{tpu_custom_call.1} parent=11 // pred_check
          %p226 = pneg %p110
        $region22: #{tpu_custom_call.1} parent=11 // pred_check_branch
          %228 = sbr.rel (%p226) target = $region24
        $region23: #{tpu_custom_call.1} parent=11 // pred_region
          %230 = vsyncadd [#allocation10], 0
          %s231 = sshll.u32 %s3, 4
          %s232 = int_to_ptr.hbm [resolvable:$true] %s231
          %s233 = sshll.u32 [#allocation9], 4
          %s234 = int_to_ptr.vmem [resolvable:$true] %s233
          %239 = dma.hbm_to_vmem [thread:$0]  %s232, 512, %s234, [#allocation10], 128, 128, 8
        $region24: #{tpu_custom_call.1} parent=11 // pred_fallthru
          _
        // Predicated region
        $region25: #{tpu_custom_call.1} parent=11 // pred_check
          %p240 = pneg %p157
        $region26: #{tpu_custom_call.1} parent=11 // pred_check_branch
          %242 = sbr.rel (%p240) target = $region28
        $region27: #{tpu_custom_call.1} parent=11 // pred_region
          _
        $region28: #{tpu_custom_call.1} parent=11 // pred_fallthru
          _
      $region12: #{tpu_custom_call.1} parent=5 // pred_fallthru
        _
      %p243 = scmp.lt.s32.totalorder %s21, 2
      // Predicated region
      $region29: #{tpu_custom_call.1} parent=5 // pred_check
        %p244 = pneg %p243
      $region30: #{tpu_custom_call.1} parent=5 // pred_check_branch
        %246 = sbr.rel (%p244) target = $region32
      $region31: #{tpu_custom_call.1} parent=5 // pred_region
        // Predicated region
        $region33: #{tpu_custom_call.1} parent=31 // pred_check
          %p247 = pneg %p41
        $region34: #{tpu_custom_call.1} parent=31 // pred_check_branch
          %249 = sbr.rel (%p247) target = $region36
        $region35: #{tpu_custom_call.1} parent=31 // pred_region
          %s250 = sand.u32 %s31, 1
          %s251 = scalar_lea.sflag [#allocation4], %s250
          %s252 = sand.u32 %s31, 1
          %s253 = smul.addr %s252, 8
          %s254 = scalar_lea.vmem [#allocation3], %s253
          %256 = vsyncadd %s251, 0
          %s257 = smul.addr %s21, 8
          %s258 = scalar_lea.hbm %s0, %s257
          %s260 = sshll.u32 %s258, 4
          %s261 = int_to_ptr.hbm [resolvable:$true] %s260
          %s262 = sshll.u32 %s254, 4
          %s263 = int_to_ptr.vmem [resolvable:$true] %s262
          %265 = dma.hbm_to_vmem [thread:$0]  %s261, 128, %s263, %s251
        $region36: #{tpu_custom_call.1} parent=31 // pred_fallthru
          _
        // Predicated region
        $region37: #{tpu_custom_call.1} parent=31 // pred_check
          %p266 = pneg %p130
        $region38: #{tpu_custom_call.1} parent=31 // pred_check_branch
          %268 = sbr.rel (%p266) target = $region40
        $region39: #{tpu_custom_call.1} parent=31 // pred_region
          %p269 = scmp.lt.s32.totalorder %s21, 1
          %s270 = scalar_select %p269, %s21, 1
          %s271 = scalar_lea.vmem %s4, %s270
        $region40: #{tpu_custom_call.1} parent=31 // pred_fallthru
          _
      $region32: #{tpu_custom_call.1} parent=5 // pred_fallthru
        _
      %p272 = scmp.le.s32.totalorder 1, %s21
      %p273 = scmp.lt.s32.totalorder %s21, 3
      %p274 = pnand %p272, %p273
      %p275 = pneg %p274
      // Predicated region
      $region41: #{tpu_custom_call.1} parent=5 // pred_check
        _
      $region42: #{tpu_custom_call.1} parent=5 // pred_check_branch
        %277 = sbr.rel (%p274) target = $region44
      $region43: #{tpu_custom_call.1} parent=5 // pred_region
        %s278 = ssub.s32 %s21, 1
        %s279 = sand.u32 %s34, 1
        %s280 = scalar_lea.sflag [#allocation4], %s279
        %s281 = sand.u32 %s34, 1
        %s282 = smul.addr %s281, 8
        %s283 = scalar_lea.vmem [#allocation3], %s282
        // Predicated region
        $region45: #{tpu_custom_call.1} parent=43 // pred_check
          %p284 = pneg %p47
        $region46: #{tpu_custom_call.1} parent=43 // pred_check_branch
          %286 = sbr.rel (%p284) target = $region48
        $region47: #{tpu_custom_call.1} parent=43 // pred_region
          %288 = dma.done %s280, 128
        $region48: #{tpu_custom_call.1} parent=43 // pred_fallthru
          _
        // Predicated region
        $region49: #{tpu_custom_call.1} parent=43 // pred_check
          %p289 = pneg %p68
        $region50: #{tpu_custom_call.1} parent=43 // pred_check_branch
          %291 = sbr.rel (%p289) target = $region52
        $region51: #{tpu_custom_call.1} parent=43 // pred_region
          %293 = dma.done [#allocation7], 512
        $region52: #{tpu_custom_call.1} parent=43 // pred_fallthru
          _
        // Predicated region
        $region53: #{tpu_custom_call.1} parent=43 // pred_check
          %p294 = pneg %p89
        $region54: #{tpu_custom_call.1} parent=43 // pred_check_branch
          %296 = sbr.rel (%p294) target = $region56
        $region55: #{tpu_custom_call.1} parent=43 // pred_region
          %298 = dma.done [#allocation7], 512
        $region56: #{tpu_custom_call.1} parent=43 // pred_fallthru
          _
        // Predicated region
        $region57: #{tpu_custom_call.1} parent=43 // pred_check
          %p299 = pneg %p110
        $region58: #{tpu_custom_call.1} parent=43 // pred_check_branch
          %301 = sbr.rel (%p299) target = $region60
        $region59: #{tpu_custom_call.1} parent=43 // pred_region
          %303 = dma.done [#allocation10], 512
        $region60: #{tpu_custom_call.1} parent=43 // pred_fallthru
          _
        %s304 = sand.u32 %s34, 1
        %s305 = scalar_lea.sflag [#allocation4], %s304
        %s306 = sand.u32 %s34, 1
        %s307 = smul.addr %s306, 8
        %s308 = scalar_lea.vmem [#allocation3], %s307
        %p309 = pneg %p47
        %p310 = pneg %p44
        %p311 = pneg %p68
        %p312 = pneg %p65
        %p313 = pneg %p89
        %p314 = pneg %p86
        %p315 = pneg %p110
        %p316 = pneg %p107
        %p317 = scmp.lt.s32.totalorder %s26, 1
        %s318 = scalar_select %p317, %s26, 1
        %s319 = scalar_lea.vmem %s4, %s318
        %p320 = pneg %p136
        %p321 = pneg %p133
        %p322 = pneg %p157
        %p323 = pneg %p154
        %p324 = pneg %p183
        %p325 = pneg %p180
        %s326 = sand.u32 %s170, 1
        %s327 = scalar_lea.sflag [#allocation5], %s326
        %s328 = sand.u32 %s170, 1
        %s329 = smul.addr %s328, 8
        %s330 = scalar_lea.vmem [#allocation11], %s329
        %p331 = scmp.lt.s32.totalorder %s26, 1
        %s332 = scalar_select %p331, %s26, 1
        %s333 = scalar_lea.vmem %s4, %s332
        %v334 = vld [vmem:[%s283] sm:$0xff]
        %s335 = sld [smem:[#allocation2]]
        %v336 = vld [vmem:[%s333] sm:$0x1]
        %v337 = vld [vmem:[#allocation6] sm:$0xff]
        %v338 = vld [vmem:[#allocation6 + $0x8] sm:$0xff]
        %v339 = vld [vmem:[#allocation6 + $0x10] sm:$0xff]
        %v340 = vld [vmem:[#allocation6 + $0x18] sm:$0xff]
        %vm341 = vcmask 261120
        %v343 = vsel %vm341, %v334, 0
        %345 = vmatpush.msra.mxu0 0.0
        %346 = vmatpush.msra.mxu0 0.0
        %347 = vmatpush.msra.mxu0 0.0
        %348 = vmatpush.msra.mxu0 0.0
        %349 = vmatpush.msra.mxu0 0.0
        %350 = vmatpush.msra.mxu0 0.0
        %351 = vmatpush.msra.mxu0 0.0
        %352 = vmatpush.msra.mxu0 0.0
        %353 = vmatpush.msra.mxu0 0.0
        %354 = vmatpush.msra.mxu0 0.0
        %355 = vmatpush.msra.mxu0 0.0
        %356 = vmatpush.msra.mxu0 0.0
        %357 = vmatpush.msra.mxu0 %v340
        %358 = vmatpush.msra.mxu0 %v339
        %359 = vmatpush.msra.mxu0 %v338
        %360 = vmatpush.msra.mxu0 %v337
        %361 = vmatmul.f32.gmra.mxu0 %v343
        %v362 = vpop.f32.mrf.mxu0
        %v363 = vadd.f32 0.0, %v362
        %364 = vdwg.mxu0
        %366 = vrot.lane.b32.xlu0 %v363, 120
        %v367 = vpop.permute.xlu0 %366
        %369 = vrot.lane.b32.xlu0 %v363, 112
        %v370 = vpop.permute.xlu0 %369
        %372 = vrot.lane.b32.xlu0 %v363, 104
        %v373 = vpop.permute.xlu0 %372
        %v375 = vmul.f32 %v363, %v363
        %v376 = vmul.f32 %v367, %v367
        %v377 = vmul.f32 %v370, %v370
        %v378 = vmul.f32 %v373, %v373
        %vm379 = vcmask 64512
        %v380 = vsel %vm379, %v375, 0.0
        %381 = vadd.xlane.f32.xlu0 %v380
        %v382 = vpop.xlane.xlu0 %381
        %v383 = vsel %vm379, %v376, 0.0
        %384 = vadd.xlane.f32.xlu0 %v383
        %v385 = vpop.xlane.xlu0 %384
        %v386 = vsel %vm379, %v377, 0.0
        %387 = vadd.xlane.f32.xlu0 %v386
        %v388 = vpop.xlane.xlu0 %387
        %v389 = vsel %vm379, %v378, 0.0
        %390 = vadd.xlane.f32.xlu0 %v389
        %v391 = vpop.xlane.xlu0 %390
        %v392 = vrsqrt.pop %v382
        %v393 = vmul.f32 %v392, %v382
        %v394 = vmul.f32 %v393, %v392
        %v395 = vmul.f32 0.5, %v394
        %v396 = vsub.f32 1.5, %v395
        %v397 = vmul.f32 %v392, %v396
        %v398 = vmul.f32 %v382, %v397
        %vm399 = vcmp.eq.f32.partialorder %v382, inf
        %v400 = vsel %vm399, %v382, %v398
        %vm401 = vcmp.eq.f32.partialorder %v382, 0.0
        %v402 = vand.u32 %v382, 2147483648
        %v403 = vsel %vm401, %v402, %v400
        %v404 = vrsqrt.pop %v385
        %v405 = vmul.f32 %v404, %v385
        %v406 = vmul.f32 %v405, %v404
        %v407 = vmul.f32 0.5, %v406
        %v408 = vsub.f32 1.5, %v407
        %v409 = vmul.f32 %v404, %v408
        %v410 = vmul.f32 %v385, %v409
        %vm411 = vcmp.eq.f32.partialorder %v385, inf
        %v412 = vsel %vm411, %v385, %v410
        %vm413 = vcmp.eq.f32.partialorder %v385, 0.0
        %v414 = vand.u32 %v385, 2147483648
        %v415 = vsel %vm413, %v414, %v412
        %v416 = vrsqrt.pop %v388
        %v417 = vmul.f32 %v416, %v388
        %v418 = vmul.f32 %v417, %v416
        %v419 = vmul.f32 0.5, %v418
        %v420 = vsub.f32 1.5, %v419
        %v421 = vmul.f32 %v416, %v420
        %v422 = vmul.f32 %v388, %v421
        %vm423 = vcmp.eq.f32.partialorder %v388, inf
        %v424 = vsel %vm423, %v388, %v422
        %vm425 = vcmp.eq.f32.partialorder %v388, 0.0
        %v426 = vand.u32 %v388, 2147483648
        %v427 = vsel %vm425, %v426, %v424
        %v428 = vrsqrt.pop %v391
        %v429 = vmul.f32 %v428, %v391
        %v430 = vmul.f32 %v429, %v428
        %v431 = vmul.f32 0.5, %v430
        %v432 = vsub.f32 1.5, %v431
        %v433 = vmul.f32 %v428, %v432
        %v434 = vmul.f32 %v391, %v433
        %vm435 = vcmp.eq.f32.partialorder %v391, inf
        %v436 = vsel %vm435, %v391, %v434
        %vm437 = vcmp.eq.f32.partialorder %v391, 0.0
        %v438 = vand.u32 %v391, 2147483648
        %v439 = vsel %vm437, %v438, %v436
        %v440 = vmax.f32 %v403, 1e-12
        %v441 = vmax.f32 %v415, 1e-12
        %v442 = vmax.f32 %v427, 1e-12
        %v443 = vmax.f32 %v439, 1e-12
        %v444 = vrcp.pop %v440
        %v445 = vmul.f32 %v440, %v444
        %v446 = vsub.f32 1.0, %v445
        %v447 = vmul.f32 %v444, %v446
        %v448 = vadd.f32 %v444, %v447
        %vm449 = vweird.f32 %v440
        %vm450 = vweird.f32 %v444
        %vm451 = vmor %vm449, %vm450
        %v452 = vsel %vm451, %v444, %v448
        %v453 = vand.u32 2147483647, %v440
        %vm454 = vcmp.eq.f32.partialorder %v453, 8.507059e+37
        %v455 = vand.u32 %v440, 2147483648
        %v456 = vor.u32 1.1754944e-38, %v455
        %v457 = vsel %vm454, %v456, %v452
        %v458 = vmul.f32 %v363, %v457
        %v459 = vrcp.pop %v441
        %v460 = vmul.f32 %v441, %v459
        %v461 = vsub.f32 1.0, %v460
        %v462 = vmul.f32 %v459, %v461
        %v463 = vadd.f32 %v459, %v462
        %vm464 = vweird.f32 %v441
        %vm465 = vweird.f32 %v459
        %vm466 = vmor %vm464, %vm465
        %v467 = vsel %vm466, %v459, %v463
        %v468 = vand.u32 2147483647, %v441
        %vm469 = vcmp.eq.f32.partialorder %v468, 8.507059e+37
        %v470 = vand.u32 %v441, 2147483648
        %v471 = vor.u32 1.1754944e-38, %v470
        %v472 = vsel %vm469, %v471, %v467
        %v473 = vmul.f32 %v367, %v472
        %v474 = vrcp.pop %v442
        %v475 = vmul.f32 %v442, %v474
        %v476 = vsub.f32 1.0, %v475
        %v477 = vmul.f32 %v474, %v476
        %v478 = vadd.f32 %v474, %v477
        %vm479 = vweird.f32 %v442
        %vm480 = vweird.f32 %v474
        %vm481 = vmor %vm479, %vm480
        %v482 = vsel %vm481, %v474, %v478
        %v483 = vand.u32 2147483647, %v442
        %vm484 = vcmp.eq.f32.partialorder %v483, 8.507059e+37
        %v485 = vand.u32 %v442, 2147483648
        %v486 = vor.u32 1.1754944e-38, %v485
        %v487 = vsel %vm484, %v486, %v482
        %v488 = vmul.f32 %v370, %v487
        %v489 = vrcp.pop %v443
        %v490 = vmul.f32 %v443, %v489
        %v491 = vsub.f32 1.0, %v490
        %v492 = vmul.f32 %v489, %v491
        %v493 = vadd.f32 %v489, %v492
        %vm494 = vweird.f32 %v443
        %vm495 = vweird.f32 %v489
        %vm496 = vmor %vm494, %vm495
        %v497 = vsel %vm496, %v489, %v493
        %v498 = vand.u32 2147483647, %v443
        %vm499 = vcmp.eq.f32.partialorder %v498, 8.507059e+37
        %v500 = vand.u32 %v443, 2147483648
        %v501 = vor.u32 1.1754944e-38, %v500
        %v502 = vsel %vm499, %v501, %v497
        %v503 = vmul.f32 %v373, %v502
        %508 = vrot.lane.b32.xlu0 %v375, 96
        %v509 = vpop.permute.xlu0 %508
        %510 = vrot.lane.b32.xlu0 %v376, 96
        %v511 = vpop.permute.xlu0 %510
        %512 = vrot.lane.b32.xlu0 %v377, 96
        %v513 = vpop.permute.xlu0 %512
        %514 = vrot.lane.b32.xlu0 %v378, 96
        %v515 = vpop.permute.xlu0 %514
        %v520 = vsel %vm379, %v509, 0.0
        %521 = vadd.xlane.f32.xlu0 %v520
        %v522 = vpop.xlane.xlu0 %521
        %v523 = vsel %vm379, %v511, 0.0
        %524 = vadd.xlane.f32.xlu0 %v523
        %v525 = vpop.xlane.xlu0 %524
        %v526 = vsel %vm379, %v513, 0.0
        %527 = vadd.xlane.f32.xlu0 %v526
        %v528 = vpop.xlane.xlu0 %527
        %v529 = vsel %vm379, %v515, 0.0
        %530 = vadd.xlane.f32.xlu0 %v529
        %v531 = vpop.xlane.xlu0 %530
        %v532 = vrsqrt.pop %v522
        %v533 = vmul.f32 %v532, %v522
        %v534 = vmul.f32 %v533, %v532
        %v535 = vmul.f32 0.5, %v534
        %v536 = vsub.f32 1.5, %v535
        %v537 = vmul.f32 %v532, %v536
        %v538 = vmul.f32 %v522, %v537
        %vm539 = vcmp.eq.f32.partialorder %v522, inf
        %v540 = vsel %vm539, %v522, %v538
        %vm541 = vcmp.eq.f32.partialorder %v522, 0.0
        %v542 = vand.u32 %v522, 2147483648
        %v543 = vsel %vm541, %v542, %v540
        %v544 = vrsqrt.pop %v525
        %v545 = vmul.f32 %v544, %v525
        %v546 = vmul.f32 %v545, %v544
        %v547 = vmul.f32 0.5, %v546
        %v548 = vsub.f32 1.5, %v547
        %v549 = vmul.f32 %v544, %v548
        %v550 = vmul.f32 %v525, %v549
        %vm551 = vcmp.eq.f32.partialorder %v525, inf
        %v552 = vsel %vm551, %v525, %v550
        %vm553 = vcmp.eq.f32.partialorder %v525, 0.0
        %v554 = vand.u32 %v525, 2147483648
        %v555 = vsel %vm553, %v554, %v552
        %v556 = vrsqrt.pop %v528
        %v557 = vmul.f32 %v556, %v528
        %v558 = vmul.f32 %v557, %v556
        %v559 = vmul.f32 0.5, %v558
        %v560 = vsub.f32 1.5, %v559
        %v561 = vmul.f32 %v556, %v560
        %v562 = vmul.f32 %v528, %v561
        %vm563 = vcmp.eq.f32.partialorder %v528, inf
        %v564 = vsel %vm563, %v528, %v562
        %vm565 = vcmp.eq.f32.partialorder %v528, 0.0
        %v566 = vand.u32 %v528, 2147483648
        %v567 = vsel %vm565, %v566, %v564
        %v568 = vrsqrt.pop %v531
        %v569 = vmul.f32 %v568, %v531
        %v570 = vmul.f32 %v569, %v568
        %v571 = vmul.f32 0.5, %v570
        %v572 = vsub.f32 1.5, %v571
        %v573 = vmul.f32 %v568, %v572
        %v574 = vmul.f32 %v531, %v573
        %vm575 = vcmp.eq.f32.partialorder %v531, inf
        %v576 = vsel %vm575, %v531, %v574
        %vm577 = vcmp.eq.f32.partialorder %v531, 0.0
        %v578 = vand.u32 %v531, 2147483648
        %v579 = vsel %vm577, %v578, %v576
        %v580 = vmax.f32 %v543, 1e-12
        %v581 = vmax.f32 %v555, 1e-12
        %v582 = vmax.f32 %v567, 1e-12
        %v583 = vmax.f32 %v579, 1e-12
        %v584 = vrcp.pop %v580
        %v585 = vmul.f32 %v580, %v584
        %v586 = vsub.f32 1.0, %v585
        %v587 = vmul.f32 %v584, %v586
        %v588 = vadd.f32 %v584, %v587
        %vm589 = vweird.f32 %v580
        %vm590 = vweird.f32 %v584
        %vm591 = vmor %vm589, %vm590
        %v592 = vsel %vm591, %v584, %v588
        %v593 = vand.u32 2147483647, %v580
        %vm594 = vcmp.eq.f32.partialorder %v593, 8.507059e+37
        %v595 = vand.u32 %v580, 2147483648
        %v596 = vor.u32 1.1754944e-38, %v595
        %v597 = vsel %vm594, %v596, %v592
        %v598 = vmul.f32 %v363, %v597
        %v599 = vrcp.pop %v581
        %v600 = vmul.f32 %v581, %v599
        %v601 = vsub.f32 1.0, %v600
        %v602 = vmul.f32 %v599, %v601
        %v603 = vadd.f32 %v599, %v602
        %vm604 = vweird.f32 %v581
        %vm605 = vweird.f32 %v599
        %vm606 = vmor %vm604, %vm605
        %v607 = vsel %vm606, %v599, %v603
        %v608 = vand.u32 2147483647, %v581
        %vm609 = vcmp.eq.f32.partialorder %v608, 8.507059e+37
        %v610 = vand.u32 %v581, 2147483648
        %v611 = vor.u32 1.1754944e-38, %v610
        %v612 = vsel %vm609, %v611, %v607
        %v613 = vmul.f32 %v367, %v612
        %v614 = vrcp.pop %v582
        %v615 = vmul.f32 %v582, %v614
        %v616 = vsub.f32 1.0, %v615
        %v617 = vmul.f32 %v614, %v616
        %v618 = vadd.f32 %v614, %v617
        %vm619 = vweird.f32 %v582
        %vm620 = vweird.f32 %v614
        %vm621 = vmor %vm619, %vm620
        %v622 = vsel %vm621, %v614, %v618
        %v623 = vand.u32 2147483647, %v582
        %vm624 = vcmp.eq.f32.partialorder %v623, 8.507059e+37
        %v625 = vand.u32 %v582, 2147483648
        %v626 = vor.u32 1.1754944e-38, %v625
        %v627 = vsel %vm624, %v626, %v622
        %v628 = vmul.f32 %v370, %v627
        %v629 = vrcp.pop %v583
        %v630 = vmul.f32 %v583, %v629
        %v631 = vsub.f32 1.0, %v630
        %v632 = vmul.f32 %v629, %v631
        %v633 = vadd.f32 %v629, %v632
        %vm634 = vweird.f32 %v583
        %vm635 = vweird.f32 %v629
        %vm636 = vmor %vm634, %vm635
        %v637 = vsel %vm636, %v629, %v633
        %v638 = vand.u32 2147483647, %v583
        %vm639 = vcmp.eq.f32.partialorder %v638, 8.507059e+37
        %v640 = vand.u32 %v583, 2147483648
        %v641 = vor.u32 1.1754944e-38, %v640
        %v642 = vsel %vm639, %v641, %v637
        %v643 = vmul.f32 %v373, %v642
        %645 = vrot.lane.b32.xlu0 %v598, 96
        %v646 = vpop.permute.xlu0 %645
        %v648 = vsel %vm379, %v458, 0
        %v650 = vsel %vm379, %v646, 0
        %652 = vmatpush.xpose.msra.mxu0 0.0
        %653 = vmatpush.xpose.msra.mxu0 0.0
        %654 = vmatpush.xpose.msra.mxu0 0.0
        %655 = vmatpush.xpose.msra.mxu0 0.0
        %656 = vmatpush.xpose.msra.mxu0 0.0
        %657 = vmatpush.xpose.msra.mxu0 0.0
        %658 = vmatpush.xpose.msra.mxu0 0.0
        %659 = vmatpush.xpose.msra.mxu0 0.0
        %660 = vmatpush.xpose.msra.mxu0 0.0
        %661 = vmatpush.xpose.msra.mxu0 0.0
        %662 = vmatpush.xpose.msra.mxu0 0.0
        %663 = vmatpush.xpose.msra.mxu0 0.0
        %664 = vmatpush.xpose.msra.mxu0 0.0
        %665 = vmatpush.xpose.msra.mxu0 0.0
        %666 = vmatpush.xpose.msra.mxu0 0.0
        %667 = vmatpush.xpose.msra.mxu0 %v650
        %668 = vmatmul.f32.gmra.mxu0 %v648
        %v669 = vpop.f32.mrf.mxu0
        %v670 = vadd.f32 0.0, %v669
        %671 = vdwg.mxu0
        %673 = vrot.lane.b32.xlu0 %v613, 96
        %v674 = vpop.permute.xlu0 %673
        %v676 = vsel %vm379, %v473, 0
        %v678 = vsel %vm379, %v674, 0
        %680 = vmatpush.xpose.msra.mxu0 0.0
        %681 = vmatpush.xpose.msra.mxu0 0.0
        %682 = vmatpush.xpose.msra.mxu0 0.0
        %683 = vmatpush.xpose.msra.mxu0 0.0
        %684 = vmatpush.xpose.msra.mxu0 0.0
        %685 = vmatpush.xpose.msra.mxu0 0.0
        %686 = vmatpush.xpose.msra.mxu0 0.0
        %687 = vmatpush.xpose.msra.mxu0 0.0
        %688 = vmatpush.xpose.msra.mxu0 0.0
        %689 = vmatpush.xpose.msra.mxu0 0.0
        %690 = vmatpush.xpose.msra.mxu0 0.0
        %691 = vmatpush.xpose.msra.mxu0 0.0
        %692 = vmatpush.xpose.msra.mxu0 0.0
        %693 = vmatpush.xpose.msra.mxu0 0.0
        %694 = vmatpush.xpose.msra.mxu0 0.0
        %695 = vmatpush.xpose.msra.mxu0 %v678
        %696 = vmatmul.f32.gmra.mxu0 %v676
        %v697 = vpop.f32.mrf.mxu0
        %v698 = vadd.f32 0.0, %v697
        %699 = vdwg.mxu0
        %701 = vrot.lane.b32.xlu0 %v628, 96
        %v702 = vpop.permute.xlu0 %701
        %v704 = vsel %vm379, %v488, 0
        %v706 = vsel %vm379, %v702, 0
        %708 = vmatpush.xpose.msra.mxu0 0.0
        %709 = vmatpush.xpose.msra.mxu0 0.0
        %710 = vmatpush.xpose.msra.mxu0 0.0
        %711 = vmatpush.xpose.msra.mxu0 0.0
        %712 = vmatpush.xpose.msra.mxu0 0.0
        %713 = vmatpush.xpose.msra.mxu0 0.0
        %714 = vmatpush.xpose.msra.mxu0 0.0
        %715 = vmatpush.xpose.msra.mxu0 0.0
        %716 = vmatpush.xpose.msra.mxu0 0.0
        %717 = vmatpush.xpose.msra.mxu0 0.0
        %718 = vmatpush.xpose.msra.mxu0 0.0
        %719 = vmatpush.xpose.msra.mxu0 0.0
        %720 = vmatpush.xpose.msra.mxu0 0.0
        %721 = vmatpush.xpose.msra.mxu0 0.0
        %722 = vmatpush.xpose.msra.mxu0 0.0
        %723 = vmatpush.xpose.msra.mxu0 %v706
        %724 = vmatmul.f32.gmra.mxu0 %v704
        %v725 = vpop.f32.mrf.mxu0
        %v726 = vadd.f32 0.0, %v725
        %727 = vdwg.mxu0
        %729 = vrot.lane.b32.xlu0 %v643, 96
        %v730 = vpop.permute.xlu0 %729
        %v732 = vsel %vm379, %v503, 0
        %v734 = vsel %vm379, %v730, 0
        %736 = vmatpush.xpose.msra.mxu0 0.0
        %737 = vmatpush.xpose.msra.mxu0 0.0
        %738 = vmatpush.xpose.msra.mxu0 0.0
        %739 = vmatpush.xpose.msra.mxu0 0.0
        %740 = vmatpush.xpose.msra.mxu0 0.0
        %741 = vmatpush.xpose.msra.mxu0 0.0
        %742 = vmatpush.xpose.msra.mxu0 0.0
        %743 = vmatpush.xpose.msra.mxu0 0.0
        %744 = vmatpush.xpose.msra.mxu0 0.0
        %745 = vmatpush.xpose.msra.mxu0 0.0
        %746 = vmatpush.xpose.msra.mxu0 0.0
        %747 = vmatpush.xpose.msra.mxu0 0.0
        %748 = vmatpush.xpose.msra.mxu0 0.0
        %749 = vmatpush.xpose.msra.mxu0 0.0
        %750 = vmatpush.xpose.msra.mxu0 0.0
        %751 = vmatpush.xpose.msra.mxu0 %v734
        %752 = vmatmul.f32.gmra.mxu0 %v732
        %v753 = vpop.f32.mrf.mxu0
        %v754 = vadd.f32 0.0, %v753
        %755 = vdwg.mxu0
        %v756 = vstv %s335
        %v757 = vmul.f32 %v670, %v756
        %v758 = vmul.f32 %v698, %v756
        %v759 = vmul.f32 %v726, %v756
        %v760 = vmul.f32 %v754, %v756
        %v761 = vld [vmem:[#allocation9] sm:$0xff]
        %v762 = vld [vmem:[#allocation9 + $0x8] sm:$0xff]
        %v763 = vld [vmem:[#allocation9 + $0x10] sm:$0xff]
        %v764 = vld [vmem:[#allocation9 + $0x18] sm:$0xff]
        %v765 = vadd.f32 %v757, %v761
        %v766 = vadd.f32 %v758, %v762
        %v767 = vadd.f32 %v759, %v763
        %v768 = vadd.f32 %v760, %v764
        %v769 = vperm.slane %v336, 0
        %v770 = vlaneseq
        %v771 = vshrl.u32 %v770, 7
        %773 = vset.pattern.permute.xlu0 %v771
        %774 = vperm.xlu0 %773, %v769
        %v775 = vpop.permute.xlu0 %774
        %v777 = vperm.slane %v336, 0
        %v779 = vmax.f32 %v775, %v777
        %vm780 = vcmp.gt.f32.partialorder %v779, 0.5
        %v781 = vsel %vm780, 1, 0
        %vm782 = vcmp.eq.s32.totalorder %v781, 1
        %v783 = vsel %vm782, -1e+30, %v765
        %v784 = vsel %vm782, -1e+30, %v766
        %v785 = vsel %vm782, -1e+30, %v767
        %v786 = vsel %vm782, -1e+30, %v768
        %v787 = vsel %vm379, %v783, -inf
        %788 = vmax.xlane.f32.xlu0 %v787
        %v789 = vpop.xlane.xlu0 %788
        %v790 = vsel %vm379, %v784, -inf
        %791 = vmax.xlane.f32.xlu0 %v790
        %v792 = vpop.xlane.xlu0 %791
        %v793 = vsel %vm379, %v785, -inf
        %794 = vmax.xlane.f32.xlu0 %v793
        %v795 = vpop.xlane.xlu0 %794
        %v796 = vsel %vm379, %v786, -inf
        %797 = vmax.xlane.f32.xlu0 %v796
        %v798 = vpop.xlane.xlu0 %797
        %v799 = vsub.f32 %v783, %v789
        %v800 = vsub.f32 %v784, %v792
        %v801 = vsub.f32 %v785, %v795
        %v802 = vsub.f32 %v786, %v798
        %v803 = vmul.f32 %v799, 1.442695
        %v804 = vpow.pop %v803
        %v805 = vmul.f32 %v800, 1.442695
        %v806 = vpow.pop %v805
        %v807 = vmul.f32 %v801, 1.442695
        %v808 = vpow.pop %v807
        %v809 = vmul.f32 %v802, 1.442695
        %v810 = vpow.pop %v809
        %v811 = vsel %vm379, %v804, 0.0
        %812 = vadd.xlane.f32.xlu0 %v811
        %v813 = vpop.xlane.xlu0 %812
        %v814 = vsel %vm379, %v806, 0.0
        %815 = vadd.xlane.f32.xlu0 %v814
        %v816 = vpop.xlane.xlu0 %815
        %v817 = vsel %vm379, %v808, 0.0
        %818 = vadd.xlane.f32.xlu0 %v817
        %v819 = vpop.xlane.xlu0 %818
        %v820 = vsel %vm379, %v810, 0.0
        %821 = vadd.xlane.f32.xlu0 %v820
        %v822 = vpop.xlane.xlu0 %821
        %v823 = vrcp.pop %v813
        %v824 = vmul.f32 %v813, %v823
        %v825 = vsub.f32 1.0, %v824
        %v826 = vmul.f32 %v823, %v825
        %v827 = vadd.f32 %v823, %v826
        %vm828 = vweird.f32 %v813
        %vm829 = vweird.f32 %v823
        %vm830 = vmor %vm828, %vm829
        %v831 = vsel %vm830, %v823, %v827
        %v832 = vand.u32 2147483647, %v813
        %vm833 = vcmp.eq.f32.partialorder %v832, 8.507059e+37
        %v834 = vand.u32 %v813, 2147483648
        %v835 = vor.u32 1.1754944e-38, %v834
        %v836 = vsel %vm833, %v835, %v831
        %v837 = vmul.f32 1.0, %v836
        %v838 = vrcp.pop %v816
        %v839 = vmul.f32 %v816, %v838
        %v840 = vsub.f32 1.0, %v839
        %v841 = vmul.f32 %v838, %v840
        %v842 = vadd.f32 %v838, %v841
        %vm843 = vweird.f32 %v816
        %vm844 = vweird.f32 %v838
        %vm845 = vmor %vm843, %vm844
        %v846 = vsel %vm845, %v838, %v842
        %v847 = vand.u32 2147483647, %v816
        %vm848 = vcmp.eq.f32.partialorder %v847, 8.507059e+37
        %v849 = vand.u32 %v816, 2147483648
        %v850 = vor.u32 1.1754944e-38, %v849
        %v851 = vsel %vm848, %v850, %v846
        %v852 = vmul.f32 1.0, %v851
        %v853 = vrcp.pop %v819
        %v854 = vmul.f32 %v819, %v853
        %v855 = vsub.f32 1.0, %v854
        %v856 = vmul.f32 %v853, %v855
        %v857 = vadd.f32 %v853, %v856
        %vm858 = vweird.f32 %v819
        %vm859 = vweird.f32 %v853
        %vm860 = vmor %vm858, %vm859
        %v861 = vsel %vm860, %v853, %v857
        %v862 = vand.u32 2147483647, %v819
        %vm863 = vcmp.eq.f32.partialorder %v862, 8.507059e+37
        %v864 = vand.u32 %v819, 2147483648
        %v865 = vor.u32 1.1754944e-38, %v864
        %v866 = vsel %vm863, %v865, %v861
        %v867 = vmul.f32 1.0, %v866
        %v868 = vrcp.pop %v822
        %v869 = vmul.f32 %v822, %v868
        %v870 = vsub.f32 1.0, %v869
        %v871 = vmul.f32 %v868, %v870
        %v872 = vadd.f32 %v868, %v871
        %vm873 = vweird.f32 %v822
        %vm874 = vweird.f32 %v868
        %vm875 = vmor %vm873, %vm874
        %v876 = vsel %vm875, %v868, %v872
        %v877 = vand.u32 2147483647, %v822
        %vm878 = vcmp.eq.f32.partialorder %v877, 8.507059e+37
        %v879 = vand.u32 %v822, 2147483648
        %v880 = vor.u32 1.1754944e-38, %v879
        %v881 = vsel %vm878, %v880, %v876
        %v882 = vmul.f32 1.0, %v881
        %v883 = vmul.f32 %v804, %v837
        %v884 = vmul.f32 %v806, %v852
        %v885 = vmul.f32 %v808, %v867
        %v886 = vmul.f32 %v810, %v882
        %887 = vrot.lane.b32.xlu0 %v363, 64
        %v888 = vpop.permute.xlu0 %887
        %v891 = vsel %vm379, %v883, 0
        %893 = vmatpush.msra.mxu0 0.0
        %894 = vmatpush.msra.mxu0 0.0
        %895 = vmatpush.msra.mxu0 0.0
        %896 = vmatpush.msra.mxu0 0.0
        %897 = vmatpush.msra.mxu0 0.0
        %898 = vmatpush.msra.mxu0 0.0
        %899 = vmatpush.msra.mxu0 0.0
        %900 = vmatpush.msra.mxu0 0.0
        %901 = vmatpush.msra.mxu0 0.0
        %902 = vmatpush.msra.mxu0 0.0
        %903 = vmatpush.msra.mxu0 0.0
        %904 = vmatpush.msra.mxu0 0.0
        %905 = vmatpush.msra.mxu0 0.0
        %906 = vmatpush.msra.mxu0 0.0
        %907 = vmatpush.msra.mxu0 0.0
        %908 = vmatpush.msra.mxu0 %v888
        %909 = vmatmul.f32.gmra.mxu0 %v891
        %v910 = vpop.f32.mrf.mxu0
        %v911 = vadd.f32 0.0, %v910
        %912 = vdwg.mxu0
        %913 = vrot.lane.b32.xlu0 %v367, 64
        %v914 = vpop.permute.xlu0 %913
        %v917 = vsel %vm379, %v884, 0
        %919 = vmatpush.msra.mxu0 0.0
        %920 = vmatpush.msra.mxu0 0.0
        %921 = vmatpush.msra.mxu0 0.0
        %922 = vmatpush.msra.mxu0 0.0
        %923 = vmatpush.msra.mxu0 0.0
        %924 = vmatpush.msra.mxu0 0.0
        %925 = vmatpush.msra.mxu0 0.0
        %926 = vmatpush.msra.mxu0 0.0
        %927 = vmatpush.msra.mxu0 0.0
        %928 = vmatpush.msra.mxu0 0.0
        %929 = vmatpush.msra.mxu0 0.0
        %930 = vmatpush.msra.mxu0 0.0
        %931 = vmatpush.msra.mxu0 0.0
        %932 = vmatpush.msra.mxu0 0.0
        %933 = vmatpush.msra.mxu0 0.0
        %934 = vmatpush.msra.mxu0 %v914
        %935 = vmatmul.f32.gmra.mxu0 %v917
        %v936 = vpop.f32.mrf.mxu0
        %v937 = vadd.f32 0.0, %v936
        %938 = vdwg.mxu0
        %939 = vrot.lane.b32.xlu0 %v370, 64
        %v940 = vpop.permute.xlu0 %939
        %v943 = vsel %vm379, %v885, 0
        %945 = vmatpush.msra.mxu0 0.0
        %946 = vmatpush.msra.mxu0 0.0
        %947 = vmatpush.msra.mxu0 0.0
        %948 = vmatpush.msra.mxu0 0.0
        %949 = vmatpush.msra.mxu0 0.0
        %950 = vmatpush.msra.mxu0 0.0
        %951 = vmatpush.msra.mxu0 0.0
        %952 = vmatpush.msra.mxu0 0.0
        %953 = vmatpush.msra.mxu0 0.0
        %954 = vmatpush.msra.mxu0 0.0
        %955 = vmatpush.msra.mxu0 0.0
        %956 = vmatpush.msra.mxu0 0.0
        %957 = vmatpush.msra.mxu0 0.0
        %958 = vmatpush.msra.mxu0 0.0
        %959 = vmatpush.msra.mxu0 0.0
        %960 = vmatpush.msra.mxu0 %v940
        %961 = vmatmul.f32.gmra.mxu0 %v943
        %v962 = vpop.f32.mrf.mxu0
        %v963 = vadd.f32 0.0, %v962
        %964 = vdwg.mxu0
        %965 = vrot.lane.b32.xlu0 %v373, 64
        %v966 = vpop.permute.xlu0 %965
        %v969 = vsel %vm379, %v886, 0
        %971 = vmatpush.msra.mxu0 0.0
        %972 = vmatpush.msra.mxu0 0.0
        %973 = vmatpush.msra.mxu0 0.0
        %974 = vmatpush.msra.mxu0 0.0
        %975 = vmatpush.msra.mxu0 0.0
        %976 = vmatpush.msra.mxu0 0.0
        %977 = vmatpush.msra.mxu0 0.0
        %978 = vmatpush.msra.mxu0 0.0
        %979 = vmatpush.msra.mxu0 0.0
        %980 = vmatpush.msra.mxu0 0.0
        %981 = vmatpush.msra.mxu0 0.0
        %982 = vmatpush.msra.mxu0 0.0
        %983 = vmatpush.msra.mxu0 0.0
        %984 = vmatpush.msra.mxu0 0.0
        %985 = vmatpush.msra.mxu0 0.0
        %986 = vmatpush.msra.mxu0 %v966
        %987 = vmatmul.f32.gmra.mxu0 %v969
        %v988 = vpop.f32.mrf.mxu0
        %v989 = vadd.f32 0.0, %v988
        %990 = vdwg.mxu0
        %992 = vrot.lane.b32.xlu0 %v937, 8
        %v993 = vpop.permute.xlu0 %992
        %996 = vrot.lane.b32.xlu0 %v963, 16
        %v997 = vpop.permute.xlu0 %996
        %1000 = vrot.lane.b32.xlu0 %v989, 24
        %v1001 = vpop.permute.xlu0 %1000
        %v1003 = vsel %vm379, %v911, %v993
        %vm1004 = vcmask 130048
        %v1005 = vsel %vm1004, %v1003, %v997
        %vm1006 = vcmask 195584
        %v1007 = vsel %vm1006, %v1005, %v1001
        %v1008 = vld [vmem:[#allocation8] sm:$0xff]
        %v1009 = vld [vmem:[#allocation8 + $0x8] sm:$0xff]
        %v1010 = vld [vmem:[#allocation8 + $0x10] sm:$0xff]
        %v1011 = vld [vmem:[#allocation8 + $0x18] sm:$0xff]
        %v1013 = vsel %vm341, %v1007, 0
        %1015 = vmatpush.msra.mxu0 0.0
        %1016 = vmatpush.msra.mxu0 0.0
        %1017 = vmatpush.msra.mxu0 0.0
        %1018 = vmatpush.msra.mxu0 0.0
        %1019 = vmatpush.msra.mxu0 0.0
        %1020 = vmatpush.msra.mxu0 0.0
        %1021 = vmatpush.msra.mxu0 0.0
        %1022 = vmatpush.msra.mxu0 0.0
        %1023 = vmatpush.msra.mxu0 0.0
        %1024 = vmatpush.msra.mxu0 0.0
        %1025 = vmatpush.msra.mxu0 0.0
        %1026 = vmatpush.msra.mxu0 0.0
        %1027 = vmatpush.msra.mxu0 %v1011
        %1028 = vmatpush.msra.mxu0 %v1010
        %1029 = vmatpush.msra.mxu0 %v1009
        %1030 = vmatpush.msra.mxu0 %v1008
        %1031 = vmatmul.f32.gmra.mxu0 %v1013
        %v1032 = vpop.f32.mrf.mxu0
        %v1033 = vadd.f32 0.0, %v1032
        %1034 = vdwg.mxu0
        %1035 = vst [vmem:[%s330] sm:$0xff] %v1033
        %s1036 = sand.u32 %s170, 1
        %s1037 = scalar_lea.sflag [#allocation5], %s1036
        %s1038 = sand.u32 %s170, 1
        %s1039 = smul.addr %s1038, 8
        %s1040 = scalar_lea.vmem [#allocation11], %s1039
        // Predicated region
        $region61: #{tpu_custom_call.1} parent=43 // pred_check
          %p1041 = pneg %p180
        $region62: #{tpu_custom_call.1} parent=43 // pred_check_branch
          %1043 = sbr.rel (%p1041) target = $region64
        $region63: #{tpu_custom_call.1} parent=43 // pred_region
          %1045 = vsyncadd %s1037, 0
          %s1046 = smul.addr %s26, 8
          %s1047 = scalar_lea.hbm %s6, %s1046
          %s1049 = sshll.u32 %s1040, 4
          %s1050 = int_to_ptr.vmem [resolvable:$true] %s1049
          %s1051 = sshll.u32 %s1047, 4
          %s1052 = int_to_ptr.hbm [resolvable:$true] %s1051
          %1054 = dma.vmem_to_hbm [thread:$0]  %s1050, 128, %s1052, %s1037
        $region64: #{tpu_custom_call.1} parent=43 // pred_fallthru
          _
      $region44: #{tpu_custom_call.1} parent=5 // pred_fallthru
        _
      %p1055 = scmp.le.s32.totalorder 2, %s21
      // Predicated region
      $region65: #{tpu_custom_call.1} parent=5 // pred_check
        %p1056 = pneg %p1055
      $region66: #{tpu_custom_call.1} parent=5 // pred_check_branch
        %1058 = sbr.rel (%p1056) target = $region68
      $region67: #{tpu_custom_call.1} parent=5 // pred_region
        %s1059 = ssub.s32 %s21, 2
        // Predicated region
        $region69: #{tpu_custom_call.1} parent=67 // pred_check
          %p1060 = pneg %p186
        $region70: #{tpu_custom_call.1} parent=67 // pred_check_branch
          %1062 = sbr.rel (%p1060) target = $region72
        $region71: #{tpu_custom_call.1} parent=67 // pred_region
          %s1063 = sand.u32 %s171, 1
          %s1064 = scalar_lea.sflag [#allocation5], %s1063
          %s1065 = sand.u32 %s171, 1
          %s1066 = smul.addr %s1065, 8
          %s1067 = scalar_lea.vmem [#allocation11], %s1066
          %1069 = dma.done %s1064, 128
        $region72: #{tpu_custom_call.1} parent=67 // pred_fallthru
          _
      $region68: #{tpu_custom_call.1} parent=5 // pred_fallthru
        _
    $region6: #{tpu_custom_call.1} parent=1 // loop_footer
      %s25 = sadd.s32 1, %s21
    $region7: #{tpu_custom_call.1} parent=1 // loop_footer_branch
      %20 = sbr.rel target = $region3
    $region8: #{tpu_custom_call.1} parent=1 // loop_exit
      _
    %1070 = vsyncpa [#allocation4], 1
    %s1071 = scalar_lea.sflag [#allocation4], 1
    %1072 = vsyncpa %s1071, 1
    %1073 = vsyncpa [#allocation7], 1
    %1074 = vsyncpa [#allocation10], 1
    %1075 = vsyncpa [#allocation5], 1
    %s1076 = scalar_lea.sflag [#allocation5], 1
    %1077 = vsyncpa %s1076, 1

</llo_original>
